<compile_context>
chip_gen: v7x
topology: tpu7x:2x2x1
jax: 0.10.0
libtpu: 0.0.40
codegen_flags: <defaults>
</compile_context>

<pallas_src>
import functools

import jax
import jax.numpy as jnp
from jax.experimental import pallas as pl
from jax.experimental.pallas import tpu as pltpu

# ----------------------------- small config (consistent with the module) -----------------------------
BATCH = 2
SEQ = 8
HIDDEN = 128          # lane-dense (multiple of 128)
INTERMEDIATE = 256    # lane-dense (multiple of 128)


# ----------------------------- Pallas kernel -----------------------------
def _mlp_kernel(x_ref, wgu_ref, wd_ref, o_ref, acc_ref, *, ti):
    # x_ref:   [tm, H]      bf16
    # wgu_ref: [H, 2*ti]    bf16  (gate|up fused for this I-tile)
    # wd_ref:  [ti, H]      bf16
    # o_ref:   [tm, H]      f32 (written on last reduction step)
    # acc_ref: [tm, H]      f32 VMEM scratch accumulator
    k = pl.program_id(1)

    @pl.when(k == 0)
    def _():
        acc_ref[...] = jnp.zeros_like(acc_ref)

    # Fused gate|up projection for this I-tile: one lane-dense MXU dot, f32 accumulation.
    gu = jnp.dot(x_ref[...], wgu_ref[...], preferred_element_type=jnp.float32)  # [tm, 2*ti]
    g = gu[:, :ti]          # 128-aligned slice (ti is a multiple of 128)
    u = gu[:, ti:]

    # SwiGLU in f32 (VPU + EUP), back to bf16 for the down-proj MXU dot.
    h = (g * jax.nn.sigmoid(g) * u).astype(jnp.bfloat16)

    # Partial down projection for this I-tile, accumulated in f32.
    acc_ref[...] += jnp.dot(h, wd_ref[...], preferred_element_type=jnp.float32)

    @pl.when(k == pl.num_programs(1) - 1)
    def _():
        o_ref[...] = acc_ref[...].astype(o_ref.dtype)


# ----------------------------- one-time parameter prep (NOT in the per-call path) -----------------------------
def prepare_weights(wg, wu, wd, ti):
    """Fuse gate|up per I-tile ([g_0|u_0|g_1|u_1|...]) and cast weights to bf16, once."""
    H, I = wg.shape
    assert I % ti == 0 and ti % 128 == 0, "intermediate tile must be a 128-multiple divisor of I"
    nk = I // ti
    wgu = jnp.concatenate(
        [wg.reshape(H, nk, ti), wu.reshape(H, nk, ti)], axis=2
    ).reshape(H, 2 * I).astype(jnp.bfloat16)                     # [H, 2*I], per-tile fused
    wd_b = wd.astype(jnp.bfloat16)                               # [I, H]
    return wgu, wd_b


# ----------------------------- tile selection -----------------------------
def _pick_tm(M):
    # Biggest sublane-friendly row tile that divides M; small M -> one tile (= full dim, legal).
    for tm in (512, 256, 128):
        if M % tm == 0:
            return tm
    return M


def _pick_ti(I):
    # Largest 128-multiple tile (<= 2048) that divides I; keeps double-buffered weight tiles
    # well under v7x's 64 MiB VMEM at real Llama sizes.
    assert I % 128 == 0
    ti = min(I, 2048)
    while ti > 128 and I % ti != 0:
        ti -= 128
    assert I % ti == 0
    return ti


# ----------------------------- forward wrapper -----------------------------
@functools.partial(jax.jit, static_argnames=("ti",))
def llama_mlp(x, wgu, wd_b, *, ti):
    # x: [B, S, H] f32; wgu: [H, 2*I] bf16 (pre-fused per tile); wd_b: [I, H] bf16
    B, S, H = x.shape
    I = wd_b.shape[0]
    assert H % 128 == 0 and I % 128 == 0 and I % ti == 0

    M = B * S
    x2 = x.reshape(M, H).astype(jnp.bfloat16)   # bf16 activations: half the HBM->VMEM DMA

    tm = _pick_tm(M)
    nm, nk = M // tm, I // ti

    # VMEM budget for this tiling (double-buffered operands + f32 accumulator),
    # capped below v7x's 64 MiB physical VMEM (safe on v5e/v6e's 128 MiB too).
    est = (2 * tm * H * 2           # x tile (bf16, double-buffered)
           + 2 * H * 2 * ti * 2     # fused gate|up tile (bf16)
           + 2 * ti * H * 2         # down tile (bf16)
           + 2 * tm * H * 4         # output tile (f32)
           + tm * H * 4)            # accumulator scratch (f32)
    vmem_limit = int(min(max(2 * est, 32 * 1024 * 1024), 60 * 1024 * 1024))

    out = pl.pallas_call(
        functools.partial(_mlp_kernel, ti=ti),
        out_shape=jax.ShapeDtypeStruct((M, H), x.dtype),
        grid=(nm, nk),
        in_specs=[
            pl.BlockSpec((tm, H), lambda m, k: (m, 0)),        # activations (reused across k)
            pl.BlockSpec((H, 2 * ti), lambda m, k: (0, k)),    # fused gate|up weight tile
            pl.BlockSpec((ti, H), lambda m, k: (k, 0)),        # down_proj weight tile
        ],
        out_specs=pl.BlockSpec((tm, H), lambda m, k: (m, 0)),
        scratch_shapes=[pltpu.VMEM((tm, H), jnp.float32)],
        compiler_params=pltpu.CompilerParams(
            dimension_semantics=("parallel", "arbitrary"),     # M parallel, I reduction last
            vmem_limit_bytes=vmem_limit,
        ),
    )(x2, wgu, wd_b)
    return out.reshape(B, S, H)


# ----------------------------- pure-JAX reference (for validation) -----------------------------
def _reference(x, wg, wu, wd):
    g = x @ wg
    u = x @ wu
    return (g * jax.nn.sigmoid(g) * u) @ wd


# ----------------------------- main -----------------------------
if __name__ == "__main__":
    key = jax.random.PRNGKey(0)
    ks = jax.random.split(key, 4)

    x = jax.random.normal(ks[0], (BATCH, SEQ, HIDDEN), dtype=jnp.float32)

    scl = 0.05
    wg = jax.random.normal(ks[1], (HIDDEN, INTERMEDIATE), jnp.float32) * scl
    wu = jax.random.normal(ks[2], (HIDDEN, INTERMEDIATE), jnp.float32) * scl
    wd = jax.random.normal(ks[3], (INTERMEDIATE, HIDDEN), jnp.float32) * scl

    # One-time parameter prep (hoisted out of the per-call path).
    ti = _pick_ti(INTERMEDIATE)
    wgu, wd_b = jax.block_until_ready(prepare_weights(wg, wu, wd, ti))

    out = llama_mlp(x, wgu, wd_b, ti=ti)
    out = jax.block_until_ready(out)

    ref = _reference(x, wg, wu, wd)
    assert out.shape == (BATCH, SEQ, HIDDEN)
    # bf16 MXU operands with f32 accumulation -> loosened tolerance vs f32 reference
    assert jnp.allclose(out, ref, atol=2e-2, rtol=2e-2), "mismatch vs pure-JAX reference"

    print("KERNEL_OK")
</pallas_src>

<mosaic_0001>
module attributes {stable_mosaic.version = 11 : i64} {
  func.func @_mlp_kernel(%arg0: i32, %arg1: i32, %arg2: memref<16x128xbf16, #tpu.memory_space<vmem>>, %arg3: memref<128x512xbf16, #tpu.memory_space<vmem>>, %arg4: memref<256x128xbf16, #tpu.memory_space<vmem>>, %arg5: memref<16x128xf32, #tpu.memory_space<vmem>>, %arg6: memref<16x128xf32, #tpu.memory_space<vmem>>) attributes {dimension_semantics = [#tpu.dimension_semantics<parallel>, #tpu.dimension_semantics<arbitrary>], iteration_bounds = array<i64: 1, 1>, scalar_prefetch = 0 : i64, scratch_operands = 1 : i64, tpu.core_type = #tpu.core_type<tc>, window_params = [{transform_indices = @transform_0, window_bounds = array<i64: 16, 128>}, {transform_indices = @transform_1, window_bounds = array<i64: 128, 512>}, {transform_indices = @transform_2, window_bounds = array<i64: 256, 128>}, {transform_indices = @transform_3, window_bounds = array<i64: 16, 128>}]} {
    %c0_i32 = arith.constant 0 : i32
    %0 = arith.cmpi eq, %arg1, %c0_i32 : i32
    %1 = arith.extui %0 : i1 to i32
    %c0_i32_0 = arith.constant 0 : i32
    %2 = arith.cmpi ne, %1, %c0_i32_0 : i32
    scf.if %2 {
      %cst_14 = arith.constant 0.000000e+00 : f32
      %24 = vector.broadcast %cst_14 : f32 to vector<16x128xf32>
      %c0_15 = arith.constant 0 : index
      %c0_16 = arith.constant 0 : index
      %25 = vector.load %arg6[%c0_15, %c0_16] : memref<16x128xf32, #tpu.memory_space<vmem>>, vector<16x128xf32>
      tpu.vector_store %arg6[%c0_15, %c0_16], %24 {strides = array<i32>} : memref<16x128xf32, #tpu.memory_space<vmem>>, vector<16x128xf32>,
    } else {
    }
    %c0 = arith.constant 0 : index
    %c0_1 = arith.constant 0 : index
    %3 = vector.load %arg2[%c0, %c0_1] : memref<16x128xbf16, #tpu.memory_space<vmem>>, vector<16x128xbf16>
    %c0_2 = arith.constant 0 : index
    %c0_3 = arith.constant 0 : index
    %4 = vector.load %arg3[%c0_2, %c0_3] : memref<128x512xbf16, #tpu.memory_space<vmem>>, vector<128x512xbf16>
    %cst = arith.constant dense<0.000000e+00> : vector<16x512xf32>
    %5 = tpu.matmul %3, %4, %cst {dimension_numbers = #tpu.dot_dimension_numbers<[1], [0], [0], [1], [0, 0, 1, 1], [], []>} : vector<16x128xbf16>, vector<128x512xbf16>, vector<16x512xf32> -> vector<16x512xf32>
    %6 = vector.extract_strided_slice %5 {offsets = [0, 0], sizes = [16, 256], strides = [1, 1]} : vector<16x512xf32> to vector<16x256xf32>
    %7 = vector.extract_strided_slice %5 {offsets = [0, 256], sizes = [16, 256], strides = [1, 1]} : vector<16x512xf32> to vector<16x256xf32>
    %8 = arith.negf %6 : vector<16x256xf32>
    %9 = math.exp %8 : vector<16x256xf32>
    %cst_4 = arith.constant 1.000000e+00 : f32
    %10 = vector.broadcast %cst_4 : f32 to vector<16x256xf32>
    %11 = arith.addf %10, %9 : vector<16x256xf32>
    %12 = arith.divf %10, %11 : vector<16x256xf32>
    %13 = arith.mulf %6, %12 : vector<16x256xf32>
    %14 = arith.mulf %13, %7 : vector<16x256xf32>
    %15 = arith.truncf %14 : vector<16x256xf32> to vector<16x256xbf16>
    %c0_5 = arith.constant 0 : index
    %c0_6 = arith.constant 0 : index
    %16 = vector.load %arg6[%c0_5, %c0_6] : memref<16x128xf32, #tpu.memory_space<vmem>>, vector<16x128xf32>
    %c0_7 = arith.constant 0 : index
    %c0_8 = arith.constant 0 : index
    %17 = vector.load %arg4[%c0_7, %c0_8] : memref<256x128xbf16, #tpu.memory_space<vmem>>, vector<256x128xbf16>
    %cst_9 = arith.constant dense<0.000000e+00> : vector<16x128xf32>
    %18 = tpu.matmul %15, %17, %cst_9 {dimension_numbers = #tpu.dot_dimension_numbers<[1], [0], [0], [1], [0, 0, 1, 1], [], []>} : vector<16x256xbf16>, vector<256x128xbf16>, vector<16x128xf32> -> vector<16x128xf32>
    %19 = arith.addf %16, %18 : vector<16x128xf32>
    %c0_10 = arith.constant 0 : index
    %c0_11 = arith.constant 0 : index
    %20 = vector.load %arg6[%c0_10, %c0_11] : memref<16x128xf32, #tpu.memory_space<vmem>>, vector<16x128xf32>
    tpu.vector_store %arg6[%c0_10, %c0_11], %19 {strides = array<i32>} : memref<16x128xf32, #tpu.memory_space<vmem>>, vector<16x128xf32>,
    %c0_i32_12 = arith.constant 0 : i32
    %21 = arith.cmpi eq, %arg1, %c0_i32_12 : i32
    %22 = arith.extui %21 : i1 to i32
    %c0_i32_13 = arith.constant 0 : i32
    %23 = arith.cmpi ne, %22, %c0_i32_13 : i32
    scf.if %23 {
      %c0_14 = arith.constant 0 : index
      %c0_15 = arith.constant 0 : index
      %24 = vector.load %arg6[%c0_14, %c0_15] : memref<16x128xf32, #tpu.memory_space<vmem>>, vector<16x128xf32>
      %c0_16 = arith.constant 0 : index
      %c0_17 = arith.constant 0 : index
      %25 = vector.load %arg5[%c0_16, %c0_17] : memref<16x128xf32, #tpu.memory_space<vmem>>, vector<16x128xf32>
      tpu.vector_store %arg5[%c0_16, %c0_17], %24 {strides = array<i32>} : memref<16x128xf32, #tpu.memory_space<vmem>>, vector<16x128xf32>,
    } else {
    }
    return
  }
  func.func @transform_0(%arg0: i32, %arg1: i32) -> (i32, i32) {
    %c0_i32 = arith.constant 0 : i32
    %c0_i32_0 = arith.constant 0 : i32
    return %arg0, %c0_i32 : i32, i32
  }
  func.func @transform_1(%arg0: i32, %arg1: i32) -> (i32, i32) {
    %c0_i32 = arith.constant 0 : i32
    %c0_i32_0 = arith.constant 0 : i32
    return %c0_i32, %arg1 : i32, i32
  }
  func.func @transform_2(%arg0: i32, %arg1: i32) -> (i32, i32) {
    %c0_i32 = arith.constant 0 : i32
    %c0_i32_0 = arith.constant 0 : i32
    return %arg1, %c0_i32 : i32, i32
  }
  func.func @transform_3(%arg0: i32, %arg1: i32) -> (i32, i32) {
    %c0_i32 = arith.constant 0 : i32
    %c0_i32_0 = arith.constant 0 : i32
    return %arg0, %c0_i32 : i32, i32
  }
}

</mosaic_0001>

<llo_original>
// kernel: llama_mlp.1
$region0: #{llama_mlp.1}
  #allocation0 [shape = 'u32[]', space=smem, size = 0x4, offset = 0x4, fixed_abs, tag = 'smem constant byte address 0x4 - core index']
  #allocation1 [shape = 'u32[144,128]{1,0:T(1,128)}', space=vmem, size = 0x12000, scoped, tag = 'internal scratch']
  #allocation2 [shape = 'f32[16,128]{1,0:T(8,128)}', space=vmem, size = 0x2000, scoped, tag = 'scratch operand']
  %s0 = inlined_call_operand.vmem [shape: bf16[16,128], index: 0, kind: input, shape index: {}]
  %s1 = inlined_call_operand.hbm [shape: bf16[128,512], index: 1, kind: input, shape index: {}]
  %s2 = inlined_call_operand.hbm [shape: bf16[256,128], index: 2, kind: input, shape index: {}]
  %s3 = inlined_call_operand.hbm [shape: f32[16,128], index: 3, kind: output, shape index: {}]
  %s4 = sld [smem:[#allocation0]]
  $region38: #{llama_mlp.1} parent=0
    _
  %s6 = ssub.s32 1, %s4
  %s7 = scalar_select 0, %s6, %s4
  $region1: #{llama_mlp.1} parent=0
    #allocation3 [shape = 'u8[131072]{0}', space=vmem, size = 0x20000, scoped, tag = 'input window, operand 1, single buffered']
    #allocation4 [shape = 's32[1]{0}', space=sflag, size = 0x4, scoped, tag = 'scoped memory for llama_mlp.1']
    #allocation5 [shape = 's32[1]{0}', space=sflag, size = 0x4, scoped, tag = 'scoped memory for llama_mlp.1']
    #allocation6 [shape = 'u8[65536]{0}', space=vmem, size = 0x10000, scoped, tag = 'input window, operand 2, single buffered']
    #allocation7 [shape = 's32[1]{0}', space=sflag, size = 0x4, scoped, tag = 'scoped memory for llama_mlp.1']
    #allocation8 [shape = 'u8[8192]{0}', space=vmem, size = 0x2000, scoped, tag = 'output window, operand 0, single buffered']
    %8 = vsyncpa [#allocation4], 0
    %9 = vsyncpa [#allocation7], 0
    %10 = vsyncpa [#allocation5], 0
    // Predicated region
    $region2: #{llama_mlp.1} parent=1 // pred_check
      _
    $region3: #{llama_mlp.1} parent=1 // pred_check_branch
      %12 = sbr.rel (0) target = $region5
    $region4: #{llama_mlp.1} parent=1 // pred_region
      _
    $region5: #{llama_mlp.1} parent=1 // pred_fallthru
      _
    // Predicated region
    $region6: #{llama_mlp.1} parent=1 // pred_check
      _
    $region7: #{llama_mlp.1} parent=1 // pred_check_branch
      %14 = sbr.rel (0) target = $region9
    $region8: #{llama_mlp.1} parent=1 // pred_region
      %s16 = ssub.s32 4096, 4096
      %17 = vsyncadd [#allocation4], %s16
      %s18 = sshll.u32 [#allocation3], 4
      %s19 = int_to_ptr.vmem [resolvable:$true] %s18
      %24 = dma.hbm_to_vmem [thread:$0]  %s1, 4096, %s19, [#allocation4], 256, 256, 16
    $region9: #{llama_mlp.1} parent=1 // pred_fallthru
      _
    // Predicated region
    $region10: #{llama_mlp.1} parent=1 // pred_check
      _
    $region11: #{llama_mlp.1} parent=1 // pred_check_branch
      %26 = sbr.rel (0) target = $region13
    $region12: #{llama_mlp.1} parent=1 // pred_region
      %s28 = ssub.s32 2048, 2048
      %29 = vsyncadd [#allocation7], %s28
      %s30 = sshll.u32 [#allocation6], 4
      %s31 = int_to_ptr.vmem [resolvable:$true] %s30
      %36 = dma.hbm_to_vmem [thread:$0]  %s2, 2048, %s31, [#allocation7], 64, 64, 4
    $region13: #{llama_mlp.1} parent=1 // pred_fallthru
      _
    // Predicated region
    $region14: #{llama_mlp.1} parent=1 // pred_check
      _
    $region15: #{llama_mlp.1} parent=1 // pred_check_branch
      %38 = sbr.rel (0) target = $region17
    $region16: #{llama_mlp.1} parent=1 // pred_region
      %39 = dma.done [#allocation4], 4096
    $region17: #{llama_mlp.1} parent=1 // pred_fallthru
      _
    // Predicated region
    $region18: #{llama_mlp.1} parent=1 // pred_check
      _
    $region19: #{llama_mlp.1} parent=1 // pred_check_branch
      %41 = sbr.rel (0) target = $region21
    $region20: #{llama_mlp.1} parent=1 // pred_region
      %42 = dma.done [#allocation7], 2048
    $region21: #{llama_mlp.1} parent=1 // pred_fallthru
      _
    %p44 = scmp.eq.s32.totalorder 0, 0
    // Predicated region
    $region22: #{llama_mlp.1} parent=1 // pred_check
      %p45 = pneg %p44
    $region23: #{llama_mlp.1} parent=1 // pred_check_branch
      %47 = sbr.rel (%p45) target = $region25
    $region24: #{llama_mlp.1} parent=1 // pred_region
      %48 = vst [vmem:[#allocation2] sm:$0xff] 0.0
      %49 = vst [vmem:[#allocation2 + $0x8] sm:$0xff] 0.0
    $region25: #{llama_mlp.1} parent=1 // pred_fallthru
      _
    %v50 = vld [vmem:[%s0] sm:$0xf]
    %v51 = vld [vmem:[%s0 + $0x4] sm:$0xf]
    %v52 = vld [vmem:[#allocation3] sm:$0xff]
    %v53 = vld [vmem:[#allocation3 + $0x8] sm:$0xff]
    %v54 = vld [vmem:[#allocation3 + $0x10] sm:$0xff]
    %v55 = vld [vmem:[#allocation3 + $0x18] sm:$0xff]
    %v56 = vld [vmem:[#allocation3 + $0x20] sm:$0xff]
    %v57 = vld [vmem:[#allocation3 + $0x28] sm:$0xff]
    %v58 = vld [vmem:[#allocation3 + $0x30] sm:$0xff]
    %v59 = vld [vmem:[#allocation3 + $0x38] sm:$0xff]
    %v60 = vld [vmem:[#allocation3 + $0x40] sm:$0xff]
    %v61 = vld [vmem:[#allocation3 + $0x48] sm:$0xff]
    %v62 = vld [vmem:[#allocation3 + $0x50] sm:$0xff]
    %v63 = vld [vmem:[#allocation3 + $0x58] sm:$0xff]
    %v64 = vld [vmem:[#allocation3 + $0x60] sm:$0xff]
    %v65 = vld [vmem:[#allocation3 + $0x68] sm:$0xff]
    %v66 = vld [vmem:[#allocation3 + $0x70] sm:$0xff]
    %v67 = vld [vmem:[#allocation3 + $0x78] sm:$0xff]
    %v68 = vld [vmem:[#allocation3 + $0x80] sm:$0xff]
    %v69 = vld [vmem:[#allocation3 + $0x88] sm:$0xff]
    %v70 = vld [vmem:[#allocation3 + $0x90] sm:$0xff]
    %v71 = vld [vmem:[#allocation3 + $0x98] sm:$0xff]
    %v72 = vld [vmem:[#allocation3 + $0xa0] sm:$0xff]
    %v73 = vld [vmem:[#allocation3 + $0xa8] sm:$0xff]
    %v74 = vld [vmem:[#allocation3 + $0xb0] sm:$0xff]
    %v75 = vld [vmem:[#allocation3 + $0xb8] sm:$0xff]
    %v76 = vld [vmem:[#allocation3 + $0xc0] sm:$0xff]
    %v77 = vld [vmem:[#allocation3 + $0xc8] sm:$0xff]
    %v78 = vld [vmem:[#allocation3 + $0xd0] sm:$0xff]
    %v79 = vld [vmem:[#allocation3 + $0xd8] sm:$0xff]
    %v80 = vld [vmem:[#allocation3 + $0xe0] sm:$0xff]
    %v81 = vld [vmem:[#allocation3 + $0xe8] sm:$0xff]
    %v82 = vld [vmem:[#allocation3 + $0xf0] sm:$0xff]
    %v83 = vld [vmem:[#allocation3 + $0xf8] sm:$0xff]
    %v86 = vunpack.c.l.b16 %v50
    %v87 = vunpack.c.l.b16 %v51
    %v88 = vpack.c.b16 %v87, %v86
    %v122 = vunpack.c.l.b16 %v52
    %v123 = vunpack.c.h.b16 %v52
    %v124 = vunpack.c.l.b16 %v53
    %v125 = vunpack.c.h.b16 %v53
    %v126 = vunpack.c.l.b16 %v54
    %v127 = vunpack.c.h.b16 %v54
    %v128 = vunpack.c.l.b16 %v55
    %v129 = vunpack.c.h.b16 %v55
    %v130 = vunpack.c.l.b16 %v56
    %v131 = vunpack.c.h.b16 %v56
    %v132 = vunpack.c.l.b16 %v57
    %v133 = vunpack.c.h.b16 %v57
    %v134 = vunpack.c.l.b16 %v58
    %v135 = vunpack.c.h.b16 %v58
    %v136 = vunpack.c.l.b16 %v59
    %v137 = vunpack.c.h.b16 %v59
    %v138 = vunpack.c.l.b16 %v60
    %v139 = vunpack.c.h.b16 %v60
    %v140 = vunpack.c.l.b16 %v61
    %v141 = vunpack.c.h.b16 %v61
    %v142 = vunpack.c.l.b16 %v62
    %v143 = vunpack.c.h.b16 %v62
    %v144 = vunpack.c.l.b16 %v63
    %v145 = vunpack.c.h.b16 %v63
    %v146 = vunpack.c.l.b16 %v64
    %v147 = vunpack.c.h.b16 %v64
    %v148 = vunpack.c.l.b16 %v65
    %v149 = vunpack.c.h.b16 %v65
    %v150 = vunpack.c.l.b16 %v66
    %v151 = vunpack.c.h.b16 %v66
    %v152 = vunpack.c.l.b16 %v67
    %v153 = vunpack.c.h.b16 %v67
    %v154 = vunpack.c.l.b16 %v68
    %v155 = vunpack.c.h.b16 %v68
    %v156 = vunpack.c.l.b16 %v69
    %v157 = vunpack.c.h.b16 %v69
    %v158 = vunpack.c.l.b16 %v70
    %v159 = vunpack.c.h.b16 %v70
    %v160 = vunpack.c.l.b16 %v71
    %v161 = vunpack.c.h.b16 %v71
    %v162 = vunpack.c.l.b16 %v72
    %v163 = vunpack.c.h.b16 %v72
    %v164 = vunpack.c.l.b16 %v73
    %v165 = vunpack.c.h.b16 %v73
    %v166 = vunpack.c.l.b16 %v74
    %v167 = vunpack.c.h.b16 %v74
    %v168 = vunpack.c.l.b16 %v75
    %v169 = vunpack.c.h.b16 %v75
    %v170 = vunpack.c.l.b16 %v76
    %v171 = vunpack.c.h.b16 %v76
    %v172 = vunpack.c.l.b16 %v77
    %v173 = vunpack.c.h.b16 %v77
    %v174 = vunpack.c.l.b16 %v78
    %v175 = vunpack.c.h.b16 %v78
    %v176 = vunpack.c.l.b16 %v79
    %v177 = vunpack.c.h.b16 %v79
    %v178 = vunpack.c.l.b16 %v80
    %v179 = vunpack.c.h.b16 %v80
    %v180 = vunpack.c.l.b16 %v81
    %v181 = vunpack.c.h.b16 %v81
    %v182 = vunpack.c.l.b16 %v82
    %v183 = vunpack.c.h.b16 %v82
    %v184 = vunpack.c.l.b16 %v83
    %v185 = vunpack.c.h.b16 %v83
    %v186 = vpack.c.b16 %v126, %v122
    %v187 = vpack.c.b16 %v127, %v123
    %v188 = vpack.c.b16 %v128, %v124
    %v189 = vpack.c.b16 %v129, %v125
    %v190 = vpack.c.b16 %v134, %v130
    %v191 = vpack.c.b16 %v135, %v131
    %v192 = vpack.c.b16 %v136, %v132
    %v193 = vpack.c.b16 %v137, %v133
    %v194 = vpack.c.b16 %v142, %v138
    %v195 = vpack.c.b16 %v143, %v139
    %v196 = vpack.c.b16 %v144, %v140
    %v197 = vpack.c.b16 %v145, %v141
    %v198 = vpack.c.b16 %v150, %v146
    %v199 = vpack.c.b16 %v151, %v147
    %v200 = vpack.c.b16 %v152, %v148
    %v201 = vpack.c.b16 %v153, %v149
    %v202 = vpack.c.b16 %v158, %v154
    %v203 = vpack.c.b16 %v159, %v155
    %v204 = vpack.c.b16 %v160, %v156
    %v205 = vpack.c.b16 %v161, %v157
    %v206 = vpack.c.b16 %v166, %v162
    %v207 = vpack.c.b16 %v167, %v163
    %v208 = vpack.c.b16 %v168, %v164
    %v209 = vpack.c.b16 %v169, %v165
    %v210 = vpack.c.b16 %v174, %v170
    %v211 = vpack.c.b16 %v175, %v171
    %v212 = vpack.c.b16 %v176, %v172
    %v213 = vpack.c.b16 %v177, %v173
    %v214 = vpack.c.b16 %v182, %v178
    %v215 = vpack.c.b16 %v183, %v179
    %v216 = vpack.c.b16 %v184, %v180
    %v217 = vpack.c.b16 %v185, %v181
    %250 = vmatprep.subr.bf16.mxu0 %v187
    %251 = vmatpush1.bf16.msra.mxu0 %v186
    %252 = vmatprep.subr.bf16.mxu0 %v191
    %253 = vmatpush1.bf16.msra.mxu0 %v190
    %254 = vmatprep.subr.bf16.mxu0 %v195
    %255 = vmatpush1.bf16.msra.mxu0 %v194
    %256 = vmatprep.subr.bf16.mxu0 %v199
    %257 = vmatpush1.bf16.msra.mxu0 %v198
    %258 = vmatprep.subr.bf16.mxu0 %v203
    %259 = vmatpush1.bf16.msra.mxu0 %v202
    %260 = vmatprep.subr.bf16.mxu0 %v207
    %261 = vmatpush1.bf16.msra.mxu0 %v206
    %262 = vmatprep.subr.bf16.mxu0 %v211
    %263 = vmatpush1.bf16.msra.mxu0 %v210
    %264 = vmatprep.subr.bf16.mxu0 %v215
    %265 = vmatpush1.bf16.msra.mxu0 %v214
    %266 = vmatprep.subr.bf16.mxu0 0
    %267 = vmatpush1.bf16.msra.mxu0 0
    %268 = vmatprep.subr.bf16.mxu0 0
    %269 = vmatpush1.bf16.msra.mxu0 0
    %270 = vmatprep.subr.bf16.mxu0 0
    %271 = vmatpush1.bf16.msra.mxu0 0
    %272 = vmatprep.subr.bf16.mxu0 0
    %273 = vmatpush1.bf16.msra.mxu0 0
    %274 = vmatprep.subr.bf16.mxu0 0
    %275 = vmatpush1.bf16.msra.mxu0 0
    %276 = vmatprep.subr.bf16.mxu0 0
    %277 = vmatpush1.bf16.msra.mxu0 0
    %278 = vmatprep.subr.bf16.mxu0 0
    %279 = vmatpush1.bf16.msra.mxu0 0
    %280 = vmatprep.subr.bf16.mxu0 0
    %281 = vmatpush1.bf16.msra.mxu0 0
    %282 = vmatprep.mubr.bf16.mxu0 0
    %283 = vmatmul.mubr.bf16.gmra.mrb[0].mxu0 %v88
    %v284 = vpop.f32.mrb[0].mxu0
    %v285 = vadd.f32 0.0, %v284
    %v286 = vpop.f32.mrb[0].mxu0
    %v287 = vadd.f32 0.0, %v286
    %v288 = vpop.f32.mrb[0].mxu0
    %v289 = vadd.f32 0.0, %v288
    %v290 = vpop.f32.mrb[0].mxu0
    %v291 = vadd.f32 0.0, %v290
    %292 = vdwg.mxu0
    %293 = vmatprep.subr.bf16.mxu0 %v189
    %294 = vmatpush1.bf16.msra.mxu0 %v188
    %295 = vmatprep.subr.bf16.mxu0 %v193
    %296 = vmatpush1.bf16.msra.mxu0 %v192
    %297 = vmatprep.subr.bf16.mxu0 %v197
    %298 = vmatpush1.bf16.msra.mxu0 %v196
    %299 = vmatprep.subr.bf16.mxu0 %v201
    %300 = vmatpush1.bf16.msra.mxu0 %v200
    %301 = vmatprep.subr.bf16.mxu0 %v205
    %302 = vmatpush1.bf16.msra.mxu0 %v204
    %303 = vmatprep.subr.bf16.mxu0 %v209
    %304 = vmatpush1.bf16.msra.mxu0 %v208
    %305 = vmatprep.subr.bf16.mxu0 %v213
    %306 = vmatpush1.bf16.msra.mxu0 %v212
    %307 = vmatprep.subr.bf16.mxu0 %v217
    %308 = vmatpush1.bf16.msra.mxu0 %v216
    %309 = vmatprep.subr.bf16.mxu0 0
    %310 = vmatpush1.bf16.msra.mxu0 0
    %311 = vmatprep.subr.bf16.mxu0 0
    %312 = vmatpush1.bf16.msra.mxu0 0
    %313 = vmatprep.subr.bf16.mxu0 0
    %314 = vmatpush1.bf16.msra.mxu0 0
    %315 = vmatprep.subr.bf16.mxu0 0
    %316 = vmatpush1.bf16.msra.mxu0 0
    %317 = vmatprep.subr.bf16.mxu0 0
    %318 = vmatpush1.bf16.msra.mxu0 0
    %319 = vmatprep.subr.bf16.mxu0 0
    %320 = vmatpush1.bf16.msra.mxu0 0
    %321 = vmatprep.subr.bf16.mxu0 0
    %322 = vmatpush1.bf16.msra.mxu0 0
    %323 = vmatprep.subr.bf16.mxu0 0
    %324 = vmatpush1.bf16.msra.mxu0 0
    %325 = vmatprep.mubr.bf16.mxu0 0
    %326 = vmatmul.mubr.bf16.gmra.mrb[0].mxu0 %v88
    %v327 = vpop.f32.mrb[0].mxu0
    %v328 = vadd.f32 0.0, %v327
    %v329 = vpop.f32.mrb[0].mxu0
    %v330 = vadd.f32 0.0, %v329
    %v331 = vpop.f32.mrb[0].mxu0
    %v332 = vadd.f32 0.0, %v331
    %v333 = vpop.f32.mrb[0].mxu0
    %v334 = vadd.f32 0.0, %v333
    %335 = vdwg.mxu0
    %v336 = vxor.u32 %v285, 2147483648
    %v337 = vxor.u32 %v287, 2147483648
    %v338 = vxor.u32 %v289, 2147483648
    %v339 = vxor.u32 %v291, 2147483648
    %v340 = vmul.f32 %v336, 1.442695
    %v341 = vpow.pop %v340
    %v342 = vmul.f32 %v337, 1.442695
    %v343 = vpow.pop %v342
    %v344 = vmul.f32 %v338, 1.442695
    %v345 = vpow.pop %v344
    %v346 = vmul.f32 %v339, 1.442695
    %v347 = vpow.pop %v346
    %v348 = vadd.f32 %v341, 1.0
    %v349 = vadd.f32 %v343, 1.0
    %v350 = vadd.f32 %v345, 1.0
    %v351 = vadd.f32 %v347, 1.0
    %v352 = vrcp.pop %v348
    %v353 = vmul.f32 1.0, %v352
    %v354 = vrcp.pop %v349
    %v355 = vmul.f32 1.0, %v354
    %v356 = vrcp.pop %v350
    %v357 = vmul.f32 1.0, %v356
    %v358 = vrcp.pop %v351
    %v359 = vmul.f32 1.0, %v358
    %v360 = vmul.f32 %v285, %v353
    %v361 = vmul.f32 %v287, %v355
    %v362 = vmul.f32 %v289, %v357
    %v363 = vmul.f32 %v291, %v359
    %v364 = vmul.f32 %v360, %v328
    %v365 = vmul.f32 %v361, %v330
    %v366 = vmul.f32 %v362, %v332
    %v367 = vmul.f32 %v363, %v334
    %v368 = vpack.c.bf16 %v366, %v364
    %v369 = vpack.c.bf16 %v367, %v365
    %v370 = vld [vmem:[#allocation2] sm:$0xff]
    %v371 = vld [vmem:[#allocation2 + $0x8] sm:$0xff]
    %v372 = vld [vmem:[#allocation6] sm:$0xf]
    %v373 = vld [vmem:[#allocation6 + $0x4] sm:$0xf]
    %v374 = vld [vmem:[#allocation6 + $0x8] sm:$0xf]
    %v375 = vld [vmem:[#allocation6 + $0xc] sm:$0xf]
    %v376 = vld [vmem:[#allocation6 + $0x10] sm:$0xf]
    %v377 = vld [vmem:[#allocation6 + $0x14] sm:$0xf]
    %v378 = vld [vmem:[#allocation6 + $0x18] sm:$0xf]
    %v379 = vld [vmem:[#allocation6 + $0x1c] sm:$0xf]
    %v380 = vld [vmem:[#allocation6 + $0x20] sm:$0xf]
    %v381 = vld [vmem:[#allocation6 + $0x24] sm:$0xf]
    %v382 = vld [vmem:[#allocation6 + $0x28] sm:$0xf]
    %v383 = vld [vmem:[#allocation6 + $0x2c] sm:$0xf]
    %v384 = vld [vmem:[#allocation6 + $0x30] sm:$0xf]
    %v385 = vld [vmem:[#allocation6 + $0x34] sm:$0xf]
    %v386 = vld [vmem:[#allocation6 + $0x38] sm:$0xf]
    %v387 = vld [vmem:[#allocation6 + $0x3c] sm:$0xf]
    %v388 = vld [vmem:[#allocation6 + $0x40] sm:$0xf]
    %v389 = vld [vmem:[#allocation6 + $0x44] sm:$0xf]
    %v390 = vld [vmem:[#allocation6 + $0x48] sm:$0xf]
    %v391 = vld [vmem:[#allocation6 + $0x4c] sm:$0xf]
    %v392 = vld [vmem:[#allocation6 + $0x50] sm:$0xf]
    %v393 = vld [vmem:[#allocation6 + $0x54] sm:$0xf]
    %v394 = vld [vmem:[#allocation6 + $0x58] sm:$0xf]
    %v395 = vld [vmem:[#allocation6 + $0x5c] sm:$0xf]
    %v396 = vld [vmem:[#allocation6 + $0x60] sm:$0xf]
    %v397 = vld [vmem:[#allocation6 + $0x64] sm:$0xf]
    %v398 = vld [vmem:[#allocation6 + $0x68] sm:$0xf]
    %v399 = vld [vmem:[#allocation6 + $0x6c] sm:$0xf]
    %v400 = vld [vmem:[#allocation6 + $0x70] sm:$0xf]
    %v401 = vld [vmem:[#allocation6 + $0x74] sm:$0xf]
    %v402 = vld [vmem:[#allocation6 + $0x78] sm:$0xf]
    %v403 = vld [vmem:[#allocation6 + $0x7c] sm:$0xf]
    %v436 = vunpack.c.l.b16 %v372
    %v437 = vunpack.c.l.b16 %v373
    %v438 = vunpack.c.l.b16 %v374
    %v439 = vunpack.c.l.b16 %v375
    %v440 = vunpack.c.l.b16 %v376
    %v441 = vunpack.c.l.b16 %v377
    %v442 = vunpack.c.l.b16 %v378
    %v443 = vunpack.c.l.b16 %v379
    %v444 = vunpack.c.l.b16 %v380
    %v445 = vunpack.c.l.b16 %v381
    %v446 = vunpack.c.l.b16 %v382
    %v447 = vunpack.c.l.b16 %v383
    %v448 = vunpack.c.l.b16 %v384
    %v449 = vunpack.c.l.b16 %v385
    %v450 = vunpack.c.l.b16 %v386
    %v451 = vunpack.c.l.b16 %v387
    %v452 = vunpack.c.l.b16 %v388
    %v453 = vunpack.c.l.b16 %v389
    %v454 = vunpack.c.l.b16 %v390
    %v455 = vunpack.c.l.b16 %v391
    %v456 = vunpack.c.l.b16 %v392
    %v457 = vunpack.c.l.b16 %v393
    %v458 = vunpack.c.l.b16 %v394
    %v459 = vunpack.c.l.b16 %v395
    %v460 = vunpack.c.l.b16 %v396
    %v461 = vunpack.c.l.b16 %v397
    %v462 = vunpack.c.l.b16 %v398
    %v463 = vunpack.c.l.b16 %v399
    %v464 = vunpack.c.l.b16 %v400
    %v465 = vunpack.c.l.b16 %v401
    %v466 = vunpack.c.l.b16 %v402
    %v467 = vunpack.c.l.b16 %v403
    %v468 = vpack.c.b16 %v437, %v436
    %v469 = vpack.c.b16 %v439, %v438
    %v470 = vpack.c.b16 %v441, %v440
    %v471 = vpack.c.b16 %v443, %v442
    %v472 = vpack.c.b16 %v445, %v444
    %v473 = vpack.c.b16 %v447, %v446
    %v474 = vpack.c.b16 %v449, %v448
    %v475 = vpack.c.b16 %v451, %v450
    %v476 = vpack.c.b16 %v453, %v452
    %v477 = vpack.c.b16 %v455, %v454
    %v478 = vpack.c.b16 %v457, %v456
    %v479 = vpack.c.b16 %v459, %v458
    %v480 = vpack.c.b16 %v461, %v460
    %v481 = vpack.c.b16 %v463, %v462
    %v482 = vpack.c.b16 %v465, %v464
    %v483 = vpack.c.b16 %v467, %v466
    %500 = vmatprep.subr.bf16.mxu0 0
    %501 = vmatpush1.bf16.msra.mxu0 %v468
    %502 = vmatprep.subr.bf16.mxu0 0
    %503 = vmatpush1.bf16.msra.mxu0 %v469
    %504 = vmatprep.subr.bf16.mxu0 0
    %505 = vmatpush1.bf16.msra.mxu0 %v470
    %506 = vmatprep.subr.bf16.mxu0 0
    %507 = vmatpush1.bf16.msra.mxu0 %v471
    %508 = vmatprep.subr.bf16.mxu0 0
    %509 = vmatpush1.bf16.msra.mxu0 %v472
    %510 = vmatprep.subr.bf16.mxu0 0
    %511 = vmatpush1.bf16.msra.mxu0 %v473
    %512 = vmatprep.subr.bf16.mxu0 0
    %513 = vmatpush1.bf16.msra.mxu0 %v474
    %514 = vmatprep.subr.bf16.mxu0 0
    %515 = vmatpush1.bf16.msra.mxu0 %v475
    %516 = vmatprep.subr.bf16.mxu0 0
    %517 = vmatpush1.bf16.msra.mxu0 %v476
    %518 = vmatprep.subr.bf16.mxu0 0
    %519 = vmatpush1.bf16.msra.mxu0 %v477
    %520 = vmatprep.subr.bf16.mxu0 0
    %521 = vmatpush1.bf16.msra.mxu0 %v478
    %522 = vmatprep.subr.bf16.mxu0 0
    %523 = vmatpush1.bf16.msra.mxu0 %v479
    %524 = vmatprep.subr.bf16.mxu0 0
    %525 = vmatpush1.bf16.msra.mxu0 %v480
    %526 = vmatprep.subr.bf16.mxu0 0
    %527 = vmatpush1.bf16.msra.mxu0 %v481
    %528 = vmatprep.subr.bf16.mxu0 0
    %529 = vmatpush1.bf16.msra.mxu0 %v482
    %530 = vmatprep.subr.bf16.mxu0 0
    %531 = vmatpush1.bf16.msra.mxu0 %v483
    %532 = vmatprep.mubr.bf16.mxu0 %v369
    %533 = vmatmul.mubr.bf16.gmra.mrb[0].mxu0 %v368
    %v534 = vpop.f32.mrb[0].mxu0
    %v535 = vadd.f32 0.0, %v534
    %v536 = vpop.f32.mrb[0].mxu0
    %v537 = vpop.f32.mrb[0].mxu0
    %v538 = vadd.f32 0.0, %v537
    %v539 = vpop.f32.mrb[0].mxu0
    %540 = vdwg.mxu0
    %v541 = vadd.f32 %v370, %v535
    %v542 = vadd.f32 %v371, %v538
    %543 = vst [vmem:[#allocation2] sm:$0xff] %v541
    %544 = vst [vmem:[#allocation2 + $0x8] sm:$0xff] %v542
    // Predicated region
    $region26: #{llama_mlp.1} parent=1 // pred_check
      %p545 = pneg %p44
    $region27: #{llama_mlp.1} parent=1 // pred_check_branch
      %547 = sbr.rel (%p545) target = $region29
    $region28: #{llama_mlp.1} parent=1 // pred_region
      %v548 = vld [vmem:[#allocation2] sm:$0xff]
      %v549 = vld [vmem:[#allocation2 + $0x8] sm:$0xff]
      %550 = vst [vmem:[#allocation8] sm:$0xff] %v548
      %551 = vst [vmem:[#allocation8 + $0x8] sm:$0xff] %v549
    $region29: #{llama_mlp.1} parent=1 // pred_fallthru
      _
    // Predicated region
    $region30: #{llama_mlp.1} parent=1 // pred_check
      _
    $region31: #{llama_mlp.1} parent=1 // pred_check_branch
      %553 = sbr.rel (0) target = $region33
    $region32: #{llama_mlp.1} parent=1 // pred_region
      %s555 = ssub.s32 256, 256
      %556 = vsyncadd [#allocation5], %s555
      %s557 = sshll.u32 [#allocation8], 4
      %s558 = int_to_ptr.vmem [resolvable:$true] %s557
      %563 = dma.vmem_to_hbm [thread:$0]  %s558, 256, %s3, [#allocation5], 128, 128, 8
    $region33: #{llama_mlp.1} parent=1 // pred_fallthru
      _
    // Predicated region
    $region34: #{llama_mlp.1} parent=1 // pred_check
      _
    $region35: #{llama_mlp.1} parent=1 // pred_check_branch
      %565 = sbr.rel (0) target = $region37
    $region36: #{llama_mlp.1} parent=1 // pred_region
      %566 = dma.done [#allocation5], 256
    $region37: #{llama_mlp.1} parent=1 // pred_fallthru
      _
    %567 = vsyncpa [#allocation4], 1
    %568 = vsyncpa [#allocation7], 1
    %569 = vsyncpa [#allocation5], 1

</llo_original>
